<compile_context>
chip_gen: v5e
topology: v5e:2x2
jax: 0.10.0
libtpu: 0.0.40
codegen_flags: <defaults>
</compile_context>

<pallas_src>
import jax
import jax.numpy as jnp
from jax.experimental import pallas as pl
from jax.experimental.pallas import tpu as pltpu

HIDDEN = (16, 32, 32, 16)
MAX_TM = 1024  # max batch tile; amortizes the ~0.35 us/step grid overhead


def _policy_mlp_kernel(x_ref,
                       w1_ref, b1_ref,
                       w2_ref, b2_ref,
                       w3_ref, b3_ref,
                       w4_ref, b4_ref,
                       w5_ref, b5_ref,
                       out_ref):
    """Fused 5-layer MLP (Linear+ReLU x4, Linear) + softmax over dim=1."""
    # bf16 operands into the MXU, f32 accumulation, f32 elementwise math.
    x = x_ref[...].astype(jnp.bfloat16)

    h = jnp.dot(x, w1_ref[...], preferred_element_type=jnp.float32) + b1_ref[...]
    h = jnp.maximum(h, 0.0)

    h = jnp.dot(h.astype(jnp.bfloat16), w2_ref[...],
                preferred_element_type=jnp.float32) + b2_ref[...]
    h = jnp.maximum(h, 0.0)

    h = jnp.dot(h.astype(jnp.bfloat16), w3_ref[...],
                preferred_element_type=jnp.float32) + b3_ref[...]
    h = jnp.maximum(h, 0.0)

    h = jnp.dot(h.astype(jnp.bfloat16), w4_ref[...],
                preferred_element_type=jnp.float32) + b4_ref[...]
    h = jnp.maximum(h, 0.0)

    logits = jnp.dot(h.astype(jnp.bfloat16), w5_ref[...],
                     preferred_element_type=jnp.float32) + b5_ref[...]

    # Numerically stable softmax along dim=1.  Exact divide: the denominator is
    # a (TM, 1) column, so the cost is negligible and the probabilities are
    # safe for downstream log-prob / gradient computation.
    m = jnp.max(logits, axis=1, keepdims=True)
    e = jnp.exp(logits - m)
    denom = jnp.sum(e, axis=1, keepdims=True)
    out_ref[...] = e / denom


def init_policy_params(key, obs_space_dims: int, action_space_dims: int):
    """Deterministic (seeded) parameter init matching nn.Linear shapes.

    Weights are bf16 (MXU-native), biases f32.
    """
    dims = (obs_space_dims,) + HIDDEN + (action_space_dims,)
    params = []
    for i in range(len(dims) - 1):
        fan_in, fan_out = dims[i], dims[i + 1]
        key, kw, kb = jax.random.split(key, 3)
        bound = 1.0 / (fan_in ** 0.5)  # same scale as torch.nn.Linear default
        w = jax.random.uniform(kw, (fan_in, fan_out), jnp.float32,
                               -bound, bound).astype(jnp.bfloat16)
        b = jax.random.uniform(kb, (1, fan_out), jnp.float32, -bound, bound)
        params.append((w, b))
    return params


def _choose_tiling(batch: int):
    """Returns (tile_rows, n_tiles) for the batch axis.

    Small batches (acting path): one grid step, padded only to the f32 sublane
    minimum of 8 rows.  Large rollouts: MAX_TM-row tiles (>= 2 tiles, so the
    'parallel' batch axis can use both v7x TensorCores).
    """
    if batch <= MAX_TM:
        tm = max(8, ((batch + 7) // 8) * 8)
        return tm, 1
    return MAX_TM, pl.cdiv(batch, MAX_TM)


def policy_network_forward(x, params):
    """Runs the fused Pallas kernel.  x: (batch, obs_space_dims)."""
    x = x.astype(jnp.float32)  # mirrors torch's x.float()
    batch, obs_dims = x.shape
    action_dims = params[-1][0].shape[1]

    tm, n_tiles = _choose_tiling(batch)
    padded = tm * n_tiles
    if padded != batch:
        # Padded rows are zeros; they produce uniform-ish probs and are sliced
        # off below (do not reduce over the padded output before slicing).
        x = jnp.pad(x, ((0, padded - batch), (0, 0)))

    flat_params = []
    weight_specs = []
    for w, b in params:
        flat_params.extend([w, b])
        # Constant index_map -> weights/biases stay resident in VMEM across
        # grid steps (fetched once, not re-DMA'd per batch tile).
        weight_specs.append(pl.BlockSpec(w.shape, lambda i: (0, 0)))
        weight_specs.append(pl.BlockSpec(b.shape, lambda i: (0, 0)))

    flops = 2 * padded * sum(w.shape[0] * w.shape[1] for w, _ in params)
    bytes_accessed = (
        padded * obs_dims * 4
        + padded * action_dims * 4
        + sum(w.size * w.dtype.itemsize + b.size * b.dtype.itemsize
              for w, b in params))
    cost = pl.CostEstimate(flops=flops,
                           transcendentals=padded * action_dims,
                           bytes_accessed=bytes_accessed)

    out = pl.pallas_call(
        _policy_mlp_kernel,
        out_shape=jax.ShapeDtypeStruct((padded, action_dims), jnp.float32),
        grid_spec=pltpu.PrefetchScalarGridSpec(
            num_scalar_prefetch=0,
            grid=(n_tiles,),
            in_specs=[pl.BlockSpec((tm, obs_dims), lambda i: (i, 0))]
                     + weight_specs,
            out_specs=pl.BlockSpec((tm, action_dims), lambda i: (i, 0)),
        ),
        compiler_params=pltpu.CompilerParams(
            dimension_semantics=("parallel",)),
        cost_estimate=cost,
    )(x, *flat_params)

    return out[:batch]


if __name__ == "__main__":
    obs_space_dims = 8
    action_space_dims = 4
    batch = 2

    key = jax.random.PRNGKey(0)
    key_params, key_x, key_x2, key_x3 = jax.random.split(key, 4)

    params = init_policy_params(key_params, obs_space_dims, action_space_dims)

    # Small case (acting path; single grid step, minimal padding).
    x = jax.random.normal(key_x, (batch, obs_space_dims), dtype=jnp.float32)
    probs = policy_network_forward(x, params)
    probs = jax.block_until_ready(probs)
    assert probs.shape == (batch, action_space_dims)
    assert jnp.allclose(jnp.sum(probs, axis=1), 1.0, atol=1e-3)
    assert bool(jnp.all(probs >= 0.0))

    # Mid-size rollout (single-tile fast path, non-multiple-of-8 batch).
    mid_batch = 300
    x_mid = jax.random.normal(key_x2, (mid_batch, obs_space_dims),
                              dtype=jnp.float32)
    probs_mid = policy_network_forward(x_mid, params)
    probs_mid = jax.block_until_ready(probs_mid)
    assert probs_mid.shape == (mid_batch, action_space_dims)
    assert jnp.allclose(jnp.sum(probs_mid, axis=1), 1.0, atol=1e-3)

    # Large rollout (exercises the multi-tile grid + padding path, >= 2 tiles).
    big_batch = 2500  # not a multiple of MAX_TM on purpose
    x_big = jax.random.normal(key_x3, (big_batch, obs_space_dims),
                              dtype=jnp.float32)
    probs_big = policy_network_forward(x_big, params)
    probs_big = jax.block_until_ready(probs_big)
    assert probs_big.shape == (big_batch, action_space_dims)
    assert jnp.allclose(jnp.sum(probs_big, axis=1), 1.0, atol=1e-3)
    assert bool(jnp.all(probs_big >= 0.0))

    print("KERNEL_OK")
</pallas_src>

<mosaic_0001>
module attributes {stable_mosaic.version = 11 : i64} {
  func.func @_policy_mlp_kernel(%arg0: i32, %arg1: memref<8x8xf32, #tpu.memory_space<vmem>>, %arg2: memref<8x16xbf16, #tpu.memory_space<vmem>>, %arg3: memref<1x16xf32, #tpu.memory_space<vmem>>, %arg4: memref<16x32xbf16, #tpu.memory_space<vmem>>, %arg5: memref<1x32xf32, #tpu.memory_space<vmem>>, %arg6: memref<32x32xbf16, #tpu.memory_space<vmem>>, %arg7: memref<1x32xf32, #tpu.memory_space<vmem>>, %arg8: memref<32x16xbf16, #tpu.memory_space<vmem>>, %arg9: memref<1x16xf32, #tpu.memory_space<vmem>>, %arg10: memref<16x4xbf16, #tpu.memory_space<vmem>>, %arg11: memref<1x4xf32, #tpu.memory_space<vmem>>, %arg12: memref<8x4xf32, #tpu.memory_space<vmem>>) attributes {dimension_semantics = [#tpu.dimension_semantics<parallel>], iteration_bounds = array<i64: 1>, scalar_prefetch = 0 : i64, scratch_operands = 0 : i64, tpu.core_type = #tpu.core_type<tc>, window_params = [{transform_indices = @transform_0, window_bounds = array<i64: 8, 8>}, {pipeline_mode = #tpu.pipeline_mode<synchronous>, transform_indices = @transform_1, window_bounds = array<i64: 8, 16>}, {pipeline_mode = #tpu.pipeline_mode<synchronous>, transform_indices = @transform_2, window_bounds = array<i64: 1, 16>}, {pipeline_mode = #tpu.pipeline_mode<synchronous>, transform_indices = @transform_3, window_bounds = array<i64: 16, 32>}, {pipeline_mode = #tpu.pipeline_mode<synchronous>, transform_indices = @transform_4, window_bounds = array<i64: 1, 32>}, {pipeline_mode = #tpu.pipeline_mode<synchronous>, transform_indices = @transform_5, window_bounds = array<i64: 32, 32>}, {pipeline_mode = #tpu.pipeline_mode<synchronous>, transform_indices = @transform_6, window_bounds = array<i64: 1, 32>}, {pipeline_mode = #tpu.pipeline_mode<synchronous>, transform_indices = @transform_7, window_bounds = array<i64: 32, 16>}, {pipeline_mode = #tpu.pipeline_mode<synchronous>, transform_indices = @transform_8, window_bounds = array<i64: 1, 16>}, {pipeline_mode = #tpu.pipeline_mode<synchronous>, transform_indices = @transform_9, window_bounds = array<i64: 16, 4>}, {pipeline_mode = #tpu.pipeline_mode<synchronous>, transform_indices = @transform_10, window_bounds = array<i64: 1, 4>}, {transform_indices = @transform_11, window_bounds = array<i64: 8, 4>}]} {
    %c0 = arith.constant 0 : index
    %c0_0 = arith.constant 0 : index
    %0 = vector.load %arg1[%c0, %c0_0] : memref<8x8xf32, #tpu.memory_space<vmem>>, vector<8x8xf32>
    %1 = arith.truncf %0 : vector<8x8xf32> to vector<8x8xbf16>
    %c0_1 = arith.constant 0 : index
    %c0_2 = arith.constant 0 : index
    %2 = vector.load %arg2[%c0_1, %c0_2] : memref<8x16xbf16, #tpu.memory_space<vmem>>, vector<8x16xbf16>
    %cst = arith.constant dense<0.000000e+00> : vector<8x16xf32>
    %3 = tpu.matmul %1, %2, %cst {dimension_numbers = #tpu.dot_dimension_numbers<[1], [0], [0], [1], [0, 0, 1, 1], [], []>} : vector<8x8xbf16>, vector<8x16xbf16>, vector<8x16xf32> -> vector<8x16xf32>
    %c0_3 = arith.constant 0 : index
    %c0_4 = arith.constant 0 : index
    %4 = vector.load %arg3[%c0_3, %c0_4] : memref<1x16xf32, #tpu.memory_space<vmem>>, vector<1x16xf32>
    %5 = vector.broadcast %4 : vector<1x16xf32> to vector<8x16xf32>
    %6 = arith.addf %3, %5 : vector<8x16xf32>
    %cst_5 = arith.constant 0.000000e+00 : f32
    %7 = vector.broadcast %cst_5 : f32 to vector<8x16xf32>
    %8 = arith.maximumf %6, %7 : vector<8x16xf32>
    %9 = arith.truncf %8 : vector<8x16xf32> to vector<8x16xbf16>
    %c0_6 = arith.constant 0 : index
    %c0_7 = arith.constant 0 : index
    %10 = vector.load %arg4[%c0_6, %c0_7] : memref<16x32xbf16, #tpu.memory_space<vmem>>, vector<16x32xbf16>
    %cst_8 = arith.constant dense<0.000000e+00> : vector<8x32xf32>
    %11 = tpu.matmul %9, %10, %cst_8 {dimension_numbers = #tpu.dot_dimension_numbers<[1], [0], [0], [1], [0, 0, 1, 1], [], []>} : vector<8x16xbf16>, vector<16x32xbf16>, vector<8x32xf32> -> vector<8x32xf32>
    %c0_9 = arith.constant 0 : index
    %c0_10 = arith.constant 0 : index
    %12 = vector.load %arg5[%c0_9, %c0_10] : memref<1x32xf32, #tpu.memory_space<vmem>>, vector<1x32xf32>
    %13 = vector.broadcast %12 : vector<1x32xf32> to vector<8x32xf32>
    %14 = arith.addf %11, %13 : vector<8x32xf32>
    %cst_11 = arith.constant 0.000000e+00 : f32
    %15 = vector.broadcast %cst_11 : f32 to vector<8x32xf32>
    %16 = arith.maximumf %14, %15 : vector<8x32xf32>
    %17 = arith.truncf %16 : vector<8x32xf32> to vector<8x32xbf16>
    %c0_12 = arith.constant 0 : index
    %c0_13 = arith.constant 0 : index
    %18 = vector.load %arg6[%c0_12, %c0_13] : memref<32x32xbf16, #tpu.memory_space<vmem>>, vector<32x32xbf16>
    %cst_14 = arith.constant dense<0.000000e+00> : vector<8x32xf32>
    %19 = tpu.matmul %17, %18, %cst_14 {dimension_numbers = #tpu.dot_dimension_numbers<[1], [0], [0], [1], [0, 0, 1, 1], [], []>} : vector<8x32xbf16>, vector<32x32xbf16>, vector<8x32xf32> -> vector<8x32xf32>
    %c0_15 = arith.constant 0 : index
    %c0_16 = arith.constant 0 : index
    %20 = vector.load %arg7[%c0_15, %c0_16] : memref<1x32xf32, #tpu.memory_space<vmem>>, vector<1x32xf32>
    %21 = vector.broadcast %20 : vector<1x32xf32> to vector<8x32xf32>
    %22 = arith.addf %19, %21 : vector<8x32xf32>
    %cst_17 = arith.constant 0.000000e+00 : f32
    %23 = vector.broadcast %cst_17 : f32 to vector<8x32xf32>
    %24 = arith.maximumf %22, %23 : vector<8x32xf32>
    %25 = arith.truncf %24 : vector<8x32xf32> to vector<8x32xbf16>
    %c0_18 = arith.constant 0 : index
    %c0_19 = arith.constant 0 : index
    %26 = vector.load %arg8[%c0_18, %c0_19] : memref<32x16xbf16, #tpu.memory_space<vmem>>, vector<32x16xbf16>
    %cst_20 = arith.constant dense<0.000000e+00> : vector<8x16xf32>
    %27 = tpu.matmul %25, %26, %cst_20 {dimension_numbers = #tpu.dot_dimension_numbers<[1], [0], [0], [1], [0, 0, 1, 1], [], []>} : vector<8x32xbf16>, vector<32x16xbf16>, vector<8x16xf32> -> vector<8x16xf32>
    %c0_21 = arith.constant 0 : index
    %c0_22 = arith.constant 0 : index
    %28 = vector.load %arg9[%c0_21, %c0_22] : memref<1x16xf32, #tpu.memory_space<vmem>>, vector<1x16xf32>
    %29 = vector.broadcast %28 : vector<1x16xf32> to vector<8x16xf32>
    %30 = arith.addf %27, %29 : vector<8x16xf32>
    %cst_23 = arith.constant 0.000000e+00 : f32
    %31 = vector.broadcast %cst_23 : f32 to vector<8x16xf32>
    %32 = arith.maximumf %30, %31 : vector<8x16xf32>
    %33 = arith.truncf %32 : vector<8x16xf32> to vector<8x16xbf16>
    %c0_24 = arith.constant 0 : index
    %c0_25 = arith.constant 0 : index
    %34 = vector.load %arg10[%c0_24, %c0_25] : memref<16x4xbf16, #tpu.memory_space<vmem>>, vector<16x4xbf16>
    %cst_26 = arith.constant dense<0.000000e+00> : vector<8x4xf32>
    %35 = tpu.matmul %33, %34, %cst_26 {dimension_numbers = #tpu.dot_dimension_numbers<[1], [0], [0], [1], [0, 0, 1, 1], [], []>} : vector<8x16xbf16>, vector<16x4xbf16>, vector<8x4xf32> -> vector<8x4xf32>
    %c0_27 = arith.constant 0 : index
    %c0_28 = arith.constant 0 : index
    %36 = vector.load %arg11[%c0_27, %c0_28] : memref<1x4xf32, #tpu.memory_space<vmem>>, vector<1x4xf32>
    %37 = vector.broadcast %36 : vector<1x4xf32> to vector<8x4xf32>
    %38 = arith.addf %35, %37 : vector<8x4xf32>
    %cst_29 = arith.constant dense<0xFF800000> : vector<8xf32>
    %39 = vector.multi_reduction <maximumf>, %38, %cst_29 [1] : vector<8x4xf32> to vector<8xf32>
    %40 = vector.shape_cast %39 : vector<8xf32> to vector<8x1xf32>
    %41 = vector.broadcast %40 : vector<8x1xf32> to vector<8x4xf32>
    %42 = arith.subf %38, %41 : vector<8x4xf32>
    %43 = math.exp %42 : vector<8x4xf32>
    %cst_30 = arith.constant dense<0.000000e+00> : vector<8xf32>
    %44 = vector.multi_reduction <add>, %43, %cst_30 [1] : vector<8x4xf32> to vector<8xf32>
    %45 = vector.shape_cast %44 : vector<8xf32> to vector<8x1xf32>
    %46 = vector.broadcast %45 : vector<8x1xf32> to vector<8x4xf32>
    %47 = arith.divf %43, %46 : vector<8x4xf32>
    %c0_31 = arith.constant 0 : index
    %c0_32 = arith.constant 0 : index
    %48 = vector.load %arg12[%c0_31, %c0_32] : memref<8x4xf32, #tpu.memory_space<vmem>>, vector<8x4xf32>
    tpu.vector_store %arg12[%c0_31, %c0_32], %47 {strides = array<i32>} : memref<8x4xf32, #tpu.memory_space<vmem>>, vector<8x4xf32>,
    return
  }
  func.func @transform_0(%arg0: i32) -> (i32, i32) {
    %c0_i32 = arith.constant 0 : i32
    %c0_i32_0 = arith.constant 0 : i32
    return %arg0, %c0_i32 : i32, i32
  }
  func.func @transform_1(%arg0: i32) -> (i32, i32) {
    %c0_i32 = arith.constant 0 : i32
    %c0_i32_0 = arith.constant 0 : i32
    %c0_i32_1 = arith.constant 0 : i32
    return %c0_i32, %c0_i32_0 : i32, i32
  }
  func.func @transform_2(%arg0: i32) -> (i32, i32) {
    %c0_i32 = arith.constant 0 : i32
    %c0_i32_0 = arith.constant 0 : i32
    %c0_i32_1 = arith.constant 0 : i32
    return %c0_i32, %c0_i32_0 : i32, i32
  }
  func.func @transform_3(%arg0: i32) -> (i32, i32) {
    %c0_i32 = arith.constant 0 : i32
    %c0_i32_0 = arith.constant 0 : i32
    %c0_i32_1 = arith.constant 0 : i32
    return %c0_i32, %c0_i32_0 : i32, i32
  }
  func.func @transform_4(%arg0: i32) -> (i32, i32) {
    %c0_i32 = arith.constant 0 : i32
    %c0_i32_0 = arith.constant 0 : i32
    %c0_i32_1 = arith.constant 0 : i32
    return %c0_i32, %c0_i32_0 : i32, i32
  }
  func.func @transform_5(%arg0: i32) -> (i32, i32) {
    %c0_i32 = arith.constant 0 : i32
    %c0_i32_0 = arith.constant 0 : i32
    %c0_i32_1 = arith.constant 0 : i32
    return %c0_i32, %c0_i32_0 : i32, i32
  }
  func.func @transform_6(%arg0: i32) -> (i32, i32) {
    %c0_i32 = arith.constant 0 : i32
    %c0_i32_0 = arith.constant 0 : i32
    %c0_i32_1 = arith.constant 0 : i32
    return %c0_i32, %c0_i32_0 : i32, i32
  }
  func.func @transform_7(%arg0: i32) -> (i32, i32) {
    %c0_i32 = arith.constant 0 : i32
    %c0_i32_0 = arith.constant 0 : i32
    %c0_i32_1 = arith.constant 0 : i32
    return %c0_i32, %c0_i32_0 : i32, i32
  }
  func.func @transform_8(%arg0: i32) -> (i32, i32) {
    %c0_i32 = arith.constant 0 : i32
    %c0_i32_0 = arith.constant 0 : i32
    %c0_i32_1 = arith.constant 0 : i32
    return %c0_i32, %c0_i32_0 : i32, i32
  }
  func.func @transform_9(%arg0: i32) -> (i32, i32) {
    %c0_i32 = arith.constant 0 : i32
    %c0_i32_0 = arith.constant 0 : i32
    %c0_i32_1 = arith.constant 0 : i32
    return %c0_i32, %c0_i32_0 : i32, i32
  }
  func.func @transform_10(%arg0: i32) -> (i32, i32) {
    %c0_i32 = arith.constant 0 : i32
    %c0_i32_0 = arith.constant 0 : i32
    %c0_i32_1 = arith.constant 0 : i32
    return %c0_i32, %c0_i32_0 : i32, i32
  }
  func.func @transform_11(%arg0: i32) -> (i32, i32) {
    %c0_i32 = arith.constant 0 : i32
    %c0_i32_0 = arith.constant 0 : i32
    return %arg0, %c0_i32 : i32, i32
  }
}

</mosaic_0001>

<llo_original>
// kernel: tpu_custom_call.1
$region0: #{tpu_custom_call.1}
  #allocation0 [shape = 'u32[]', space=smem, size = 0x4, offset = 0x4, fixed_abs, tag = 'smem constant byte address 0x4 - core index']
  #allocation1 [shape = 'u32[72,128]{1,0:T(1,128)}', space=vmem, size = 0x9000, scoped, tag = 'internal scratch']
  %s0 = inlined_call_operand.vmem [shape: f32[8,8], index: 0, kind: input, shape index: {}]
  %s1 = inlined_call_operand.vmem [shape: bf16[8,16], index: 1, kind: input, shape index: {}]
  %s2 = inlined_call_operand.vmem [shape: f32[1,16], index: 2, kind: input, shape index: {}]
  %s3 = inlined_call_operand.hbm [shape: bf16[16,32], index: 3, kind: input, shape index: {}]
  %s4 = inlined_call_operand.vmem [shape: f32[1,32], index: 4, kind: input, shape index: {}]
  %s5 = inlined_call_operand.vmem [shape: bf16[32,32], index: 5, kind: input, shape index: {}]
  %s6 = inlined_call_operand.hbm [shape: f32[1,32], index: 6, kind: input, shape index: {}]
  %s7 = inlined_call_operand.vmem [shape: bf16[32,16], index: 7, kind: input, shape index: {}]
  %s8 = inlined_call_operand.vmem [shape: f32[1,16], index: 8, kind: input, shape index: {}]
  %s9 = inlined_call_operand.vmem [shape: bf16[16,4], index: 9, kind: input, shape index: {}]
  %s10 = inlined_call_operand.vmem [shape: f32[1,4], index: 10, kind: input, shape index: {}]
  %s11 = inlined_call_operand.vmem [shape: f32[8,4], index: 11, kind: output, shape index: {}]
  %s12 = sld [smem:[#allocation0]]
  $region62: #{tpu_custom_call.1} parent=0
    _
  %s14 = ssub.s32 1, %s12
  %s15 = scalar_select 0, %s14, %s12
  $region1: #{tpu_custom_call.1} parent=0
    #allocation2 [shape = 'u8[4096]{0}', space=vmem, size = 0x1000, scoped, tag = 'input window, operand 3, single buffered']
    #allocation3 [shape = 's32[1]{0}', space=sflag, size = 0x4, scoped, tag = 'scoped memory for tpu_custom_call.1']
    #allocation4 [shape = 'u8[512]{0}', space=vmem, size = 0x400, scoped, tag = 'input window, operand 6, single buffered']
    #allocation5 [shape = 's32[1]{0}', space=sflag, size = 0x4, scoped, tag = 'scoped memory for tpu_custom_call.1']
    %16 = vsyncpa [#allocation3], 0
    %17 = vsyncpa [#allocation5], 0
    // Predicated region
    $region2: #{tpu_custom_call.1} parent=1 // pred_check
      _
    $region3: #{tpu_custom_call.1} parent=1 // pred_check_branch
      %19 = sbr.rel (0) target = $region5
    $region4: #{tpu_custom_call.1} parent=1 // pred_region
      _
    $region5: #{tpu_custom_call.1} parent=1 // pred_fallthru
      _
    // Predicated region
    $region6: #{tpu_custom_call.1} parent=1 // pred_check
      _
    $region7: #{tpu_custom_call.1} parent=1 // pred_check_branch
      %21 = sbr.rel (0) target = $region9
    $region8: #{tpu_custom_call.1} parent=1 // pred_region
      _
    $region9: #{tpu_custom_call.1} parent=1 // pred_fallthru
      _
    // Predicated region
    $region10: #{tpu_custom_call.1} parent=1 // pred_check
      _
    $region11: #{tpu_custom_call.1} parent=1 // pred_check_branch
      %23 = sbr.rel (0) target = $region13
    $region12: #{tpu_custom_call.1} parent=1 // pred_region
      _
    $region13: #{tpu_custom_call.1} parent=1 // pred_fallthru
      _
    // Predicated region
    $region14: #{tpu_custom_call.1} parent=1 // pred_check
      _
    $region15: #{tpu_custom_call.1} parent=1 // pred_check_branch
      %25 = sbr.rel (0) target = $region17
    $region16: #{tpu_custom_call.1} parent=1 // pred_region
      %27 = vsyncadd [#allocation3], 0
      %s28 = sshll.u32 %s3, 4
      %s29 = int_to_ptr.hbm [resolvable:$true] %s28
      %s30 = sshll.u32 [#allocation2], 4
      %s31 = int_to_ptr.vmem [resolvable:$true] %s30
      %36 = dma.hbm_to_vmem [thread:$0]  %s29, 128, %s31, [#allocation3], 64, 64, 4
    $region17: #{tpu_custom_call.1} parent=1 // pred_fallthru
      _
    // Predicated region
    $region18: #{tpu_custom_call.1} parent=1 // pred_check
      _
    $region19: #{tpu_custom_call.1} parent=1 // pred_check_branch
      %38 = sbr.rel (0) target = $region21
    $region20: #{tpu_custom_call.1} parent=1 // pred_region
      _
    $region21: #{tpu_custom_call.1} parent=1 // pred_fallthru
      _
    // Predicated region
    $region22: #{tpu_custom_call.1} parent=1 // pred_check
      _
    $region23: #{tpu_custom_call.1} parent=1 // pred_check_branch
      %40 = sbr.rel (0) target = $region25
    $region24: #{tpu_custom_call.1} parent=1 // pred_region
      _
    $region25: #{tpu_custom_call.1} parent=1 // pred_fallthru
      _
    // Predicated region
    $region26: #{tpu_custom_call.1} parent=1 // pred_check
      _
    $region27: #{tpu_custom_call.1} parent=1 // pred_check_branch
      %42 = sbr.rel (0) target = $region29
    $region28: #{tpu_custom_call.1} parent=1 // pred_region
      %44 = vsyncadd [#allocation5], 0
      %s46 = sshll.u32 %s6, 4
      %s47 = int_to_ptr.hbm [resolvable:$true] %s46
      %s48 = sshll.u32 [#allocation4], 4
      %s49 = int_to_ptr.vmem [resolvable:$true] %s48
      %51 = dma.hbm_to_vmem [thread:$0]  %s47, 16, %s49, [#allocation5]
    $region29: #{tpu_custom_call.1} parent=1 // pred_fallthru
      _
    // Predicated region
    $region30: #{tpu_custom_call.1} parent=1 // pred_check
      _
    $region31: #{tpu_custom_call.1} parent=1 // pred_check_branch
      %53 = sbr.rel (0) target = $region33
    $region32: #{tpu_custom_call.1} parent=1 // pred_region
      _
    $region33: #{tpu_custom_call.1} parent=1 // pred_fallthru
      _
    // Predicated region
    $region34: #{tpu_custom_call.1} parent=1 // pred_check
      _
    $region35: #{tpu_custom_call.1} parent=1 // pred_check_branch
      %55 = sbr.rel (0) target = $region37
    $region36: #{tpu_custom_call.1} parent=1 // pred_region
      _
    $region37: #{tpu_custom_call.1} parent=1 // pred_fallthru
      _
    // Predicated region
    $region38: #{tpu_custom_call.1} parent=1 // pred_check
      _
    $region39: #{tpu_custom_call.1} parent=1 // pred_check_branch
      %57 = sbr.rel (0) target = $region41
    $region40: #{tpu_custom_call.1} parent=1 // pred_region
      _
    $region41: #{tpu_custom_call.1} parent=1 // pred_fallthru
      _
    // Predicated region
    $region42: #{tpu_custom_call.1} parent=1 // pred_check
      _
    $region43: #{tpu_custom_call.1} parent=1 // pred_check_branch
      %59 = sbr.rel (0) target = $region45
    $region44: #{tpu_custom_call.1} parent=1 // pred_region
      _
    $region45: #{tpu_custom_call.1} parent=1 // pred_fallthru
      _
    // Predicated region
    $region46: #{tpu_custom_call.1} parent=1 // pred_check
      _
    $region47: #{tpu_custom_call.1} parent=1 // pred_check_branch
      %61 = sbr.rel (0) target = $region49
    $region48: #{tpu_custom_call.1} parent=1 // pred_region
      %63 = dma.done [#allocation3], 128
    $region49: #{tpu_custom_call.1} parent=1 // pred_fallthru
      _
    // Predicated region
    $region50: #{tpu_custom_call.1} parent=1 // pred_check
      _
    $region51: #{tpu_custom_call.1} parent=1 // pred_check_branch
      %65 = sbr.rel (0) target = $region53
    $region52: #{tpu_custom_call.1} parent=1 // pred_region
      %67 = dma.done [#allocation5], 16
    $region53: #{tpu_custom_call.1} parent=1 // pred_fallthru
      _
    %v69 = vld [vmem:[%s0] sm:$0xff]
    %v70 = vpack.c.bf16 %v69, %v69
    %v71 = vld [vmem:[%s1] sm:$0xf]
    %v72 = vld [vmem:[%s2] sm:$0x1]
    %v74 = vperm.slane %v72, 0
    %vm76 = vcmask 64512
    %v78 = vsel %vm76, %v70, 0
    %vm80 = vcmask 1043456
    %v82 = vsel %vm80, %v71, 0
    %84 = vmatpush.bf16.msra.mxu0 0
    %85 = vmatpush.bf16.msra.mxu0 0
    %86 = vmatpush.bf16.msra.mxu0 0
    %87 = vmatpush.bf16.msra.mxu0 0
    %88 = vmatpush.bf16.msra.mxu0 0
    %89 = vmatpush.bf16.msra.mxu0 0
    %90 = vmatpush.bf16.msra.mxu0 0
    %91 = vmatpush.bf16.msra.mxu0 %v82
    %92 = vmatmul.bf16.gmra.mxu0 %v78
    %v93 = vpop.f32.mrf.mxu0
    %v94 = vadd.f32 %v74, %v93
    %v95 = vpop.f32.mrf.mxu0
    %96 = vdwg.mxu0
    %v97 = vmax.f32 %v94, 0.0
    %v98 = vpack.c.bf16 %v97, %v97
    %v99 = vld [vmem:[#allocation2] sm:$0xf]
    %v100 = vld [vmem:[#allocation2 + $0x4] sm:$0xf]
    %v101 = vld [vmem:[%s4] sm:$0x1]
    %v103 = vperm.slane %v101, 0
    %v107 = vunpack.c.l.b16 %v99
    %v108 = vunpack.c.l.b16 %v100
    %v109 = vpack.c.b16 %v108, %v107
    %vm111 = vcmask 130048
    %v113 = vsel %vm111, %v98, 0
    %115 = vmatpush.bf16.msra.mxu0 0
    %116 = vmatpush.bf16.msra.mxu0 0
    %117 = vmatpush.bf16.msra.mxu0 0
    %118 = vmatpush.bf16.msra.mxu0 0
    %119 = vmatpush.bf16.msra.mxu0 0
    %120 = vmatpush.bf16.msra.mxu0 0
    %121 = vmatpush.bf16.msra.mxu0 0
    %122 = vmatpush.bf16.msra.mxu0 %v109
    %123 = vmatmul.bf16.gmra.mxu0 %v113
    %v124 = vpop.f32.mrf.mxu0
    %v125 = vadd.f32 %v103, %v124
    %v126 = vpop.f32.mrf.mxu0
    %127 = vdwg.mxu0
    %v128 = vmax.f32 %v125, 0.0
    %v129 = vpack.c.bf16 %v128, %v128
    %v130 = vld [vmem:[%s5] sm:$0xf]
    %v131 = vld [vmem:[%s5 + $0x4] sm:$0xf]
    %v132 = vld [vmem:[%s5 + $0x8] sm:$0xf]
    %v133 = vld [vmem:[%s5 + $0xc] sm:$0xf]
    %v134 = vld [vmem:[#allocation4] sm:$0x1]
    %v136 = vperm.slane %v134, 0
    %v142 = vunpack.c.l.b16 %v130
    %v143 = vunpack.c.l.b16 %v131
    %v144 = vunpack.c.l.b16 %v132
    %v145 = vunpack.c.l.b16 %v133
    %v146 = vpack.c.b16 %v143, %v142
    %v147 = vpack.c.b16 %v145, %v144
    %vm150 = vcmask 261120
    %v152 = vsel %vm150, %v129, 0
    %154 = vmatpush.bf16.msra.mxu0 0
    %155 = vmatpush.bf16.msra.mxu0 0
    %156 = vmatpush.bf16.msra.mxu0 0
    %157 = vmatpush.bf16.msra.mxu0 0
    %158 = vmatpush.bf16.msra.mxu0 0
    %159 = vmatpush.bf16.msra.mxu0 0
    %160 = vmatpush.bf16.msra.mxu0 %v147
    %161 = vmatpush.bf16.msra.mxu0 %v146
    %162 = vmatmul.bf16.gmra.mxu0 %v152
    %v163 = vpop.f32.mrf.mxu0
    %v164 = vadd.f32 %v136, %v163
    %v165 = vpop.f32.mrf.mxu0
    %166 = vdwg.mxu0
    %v167 = vmax.f32 %v164, 0.0
    %v168 = vpack.c.bf16 %v167, %v167
    %v169 = vld [vmem:[%s7] sm:$0xf]
    %v170 = vld [vmem:[%s7 + $0x4] sm:$0xf]
    %v171 = vld [vmem:[%s7 + $0x8] sm:$0xf]
    %v172 = vld [vmem:[%s7 + $0xc] sm:$0xf]
    %v173 = vld [vmem:[%s8] sm:$0x1]
    %v175 = vperm.slane %v173, 0
    %v181 = vunpack.c.l.b16 %v169
    %v182 = vunpack.c.l.b16 %v170
    %v183 = vunpack.c.l.b16 %v171
    %v184 = vunpack.c.l.b16 %v172
    %v185 = vpack.c.b16 %v182, %v181
    %v186 = vpack.c.b16 %v184, %v183
    %v190 = vsel %vm150, %v168, 0
    %192 = vmatpush.bf16.msra.mxu0 0
    %193 = vmatpush.bf16.msra.mxu0 0
    %194 = vmatpush.bf16.msra.mxu0 0
    %195 = vmatpush.bf16.msra.mxu0 0
    %196 = vmatpush.bf16.msra.mxu0 0
    %197 = vmatpush.bf16.msra.mxu0 0
    %198 = vmatpush.bf16.msra.mxu0 %v186
    %199 = vmatpush.bf16.msra.mxu0 %v185
    %200 = vmatmul.bf16.gmra.mxu0 %v190
    %v201 = vpop.f32.mrf.mxu0
    %v202 = vadd.f32 %v175, %v201
    %v203 = vpop.f32.mrf.mxu0
    %204 = vdwg.mxu0
    %v205 = vmax.f32 %v202, 0.0
    %v206 = vpack.c.bf16 %v205, %v205
    %v207 = vld [vmem:[%s9] sm:$0xf]
    %v208 = vld [vmem:[%s9 + $0x4] sm:$0xf]
    %v209 = vld [vmem:[%s10] sm:$0x1]
    %v211 = vperm.slane %v209, 0
    %v215 = vunpack.c.l.b16 %v207
    %v216 = vunpack.c.l.b16 %v208
    %v217 = vpack.c.b16 %v216, %v215
    %v220 = vsel %vm111, %v206, 0
    %222 = vmatpush.bf16.msra.mxu0 0
    %223 = vmatpush.bf16.msra.mxu0 0
    %224 = vmatpush.bf16.msra.mxu0 0
    %225 = vmatpush.bf16.msra.mxu0 0
    %226 = vmatpush.bf16.msra.mxu0 0
    %227 = vmatpush.bf16.msra.mxu0 0
    %228 = vmatpush.bf16.msra.mxu0 0
    %229 = vmatpush.bf16.msra.mxu0 %v217
    %230 = vmatmul.bf16.gmra.mxu0 %v220
    %v231 = vpop.f32.mrf.mxu0
    %v232 = vadd.f32 %v211, %v231
    %v233 = vpop.f32.mrf.mxu0
    %234 = vdwg.mxu0
    %vm235 = vcmask 31744
    %v236 = vsel %vm235, %v232, -inf
    %237 = vmax.xlane.f32.xlu0 %v236
    %v238 = vpop.xlane.xlu0 %237
    %v239 = vsub.f32 %v232, %v238
    %v240 = vmul.f32 %v239, 1.442695
    %v241 = vpow.pop %v240
    %v242 = vsel %vm235, %v241, 0.0
    %243 = vadd.xlane.f32.xlu0 %v242
    %v244 = vpop.xlane.xlu0 %243
    %v245 = vrcp.pop %v244
    %v246 = vmul.f32 %v244, %v245
    %v247 = vsub.f32 1.0, %v246
    %v248 = vmul.f32 %v245, %v247
    %v249 = vadd.f32 %v245, %v248
    %vm250 = vweird.f32 %v244
    %vm251 = vweird.f32 %v245
    %vm252 = vmor %vm250, %vm251
    %v253 = vsel %vm252, %v245, %v249
    %v254 = vand.u32 2147483647, %v244
    %vm255 = vcmp.eq.f32.partialorder %v254, 8.507059e+37
    %v256 = vand.u32 %v244, 2147483648
    %v257 = vor.u32 1.1754944e-38, %v256
    %v258 = vsel %vm255, %v257, %v253
    %v259 = vmul.f32 %v241, %v258
    %260 = vst.msk [vmem:[%s11] sm:$0xff] %vm235, %v259
    // Predicated region
    $region54: #{tpu_custom_call.1} parent=1 // pred_check
      _
    $region55: #{tpu_custom_call.1} parent=1 // pred_check_branch
      %262 = sbr.rel (0) target = $region57
    $region56: #{tpu_custom_call.1} parent=1 // pred_region
      _
    $region57: #{tpu_custom_call.1} parent=1 // pred_fallthru
      _
    // Predicated region
    $region58: #{tpu_custom_call.1} parent=1 // pred_check
      _
    $region59: #{tpu_custom_call.1} parent=1 // pred_check_branch
      %264 = sbr.rel (0) target = $region61
    $region60: #{tpu_custom_call.1} parent=1 // pred_region
      _
    $region61: #{tpu_custom_call.1} parent=1 // pred_fallthru
      _
    %265 = vsyncpa [#allocation3], 1
    %266 = vsyncpa [#allocation5], 1

</llo_original>
